<compile_context>
chip_gen: v7x
topology: tpu7x:2x2x1
jax: 0.10.0
libtpu: 0.0.40
codegen_flags: <defaults>
</compile_context>

<pallas_src>
import jax
import jax.numpy as jnp
from jax.experimental import pallas as pl
from jax.experimental.pallas import tpu as pltpu

# ----------------------------- configuration -------------------------------
BS = 2
NVARS = 4
SEQ_LEN = 16
PATCH_LEN = 8
STRIDE = 4
D_MODEL = 32
NUM_PATCH = (max(SEQ_LEN, PATCH_LEN) - PATCH_LEN) // STRIDE + 1      # = 3
S_BEGIN = SEQ_LEN - PATCH_LEN - STRIDE * (NUM_PATCH - 1)             # = 0

ROWS = BS * NVARS                       # (batch, var) sequences processed together
ROW_TILE = 8                            # sublane-aligned row tile (ROWS == 8 here)
OUT_COLS = NUM_PATCH * D_MODEL          # lane-dense output width


# ------------------------------ Pallas kernel -------------------------------
def _embed_kernel(x_ref, w_ref, b_ref, o_ref):
    # x_ref : [ROW_TILE, seq_len]            rows = flattened (batch, var) sequences
    # w_ref : [seq_len, num_patch*d_model]   block-banded expanded embedding weight
    # b_ref : [1, num_patch*d_model]
    # o_ref : [ROW_TILE, num_patch*d_model]
    o_ref[...] = (
        jnp.dot(x_ref[...], w_ref[...], preferred_element_type=jnp.float32)
        + b_ref[...]
    ).astype(o_ref.dtype)


def _embed_matmul(xt, w_exp, b_exp):
    rows = xt.shape[0]
    return pl.pallas_call(
        _embed_kernel,
        out_shape=jax.ShapeDtypeStruct((rows, OUT_COLS), jnp.float32),
        grid=(pl.cdiv(rows, ROW_TILE),),
        in_specs=[
            pl.BlockSpec((ROW_TILE, SEQ_LEN), lambda i: (i, 0)),
            pl.BlockSpec((SEQ_LEN, OUT_COLS), lambda i: (0, 0)),
            pl.BlockSpec((1, OUT_COLS), lambda i: (0, 0)),
        ],
        out_specs=pl.BlockSpec((ROW_TILE, OUT_COLS), lambda i: (i, 0)),
        compiler_params=pltpu.CompilerParams(
            dimension_semantics=("parallel",)),     # independent rows -> v7x 2nd TC
    )(xt, w_exp, b_exp)


# ------------------------------ module forward ------------------------------
def _expand_weight(w, b):
    """Fold unfold(patch_len, stride) + Linear(patch_len, d_model) into a single
    block-banded [seq_len, num_patch*d_model] weight (pure weight preprocessing)."""
    w_exp = jnp.zeros((NUM_PATCH, SEQ_LEN, D_MODEL), jnp.float32)
    for p in range(NUM_PATCH):
        s = S_BEGIN + p * STRIDE
        w_exp = w_exp.at[p, s:s + PATCH_LEN, :].set(w)
    w_exp = jnp.transpose(w_exp, (1, 0, 2)).reshape(SEQ_LEN, OUT_COLS)
    b_exp = jnp.tile(b.reshape(1, D_MODEL), (1, NUM_PATCH))
    return w_exp, b_exp


@jax.jit
def patchtst_embed(x, w, b):
    """PatchTSTEmbed.forward (mask=False, shared=True).
    x: [bs, seq_len, nvars], w: [patch_len, d_model], b: [d_model]
    -> [bs, nvars, num_patch, d_model]."""
    # TODO(synk): mask=True path (random_masking: argsort + data-dependent gather)
    #             is training-only and not implemented here.
    # TODO(synk): shared=False (per-variable Linear) not implemented; it would use
    #             a block-diagonal expanded weight in the same single matmul.
    w_exp, b_exp = _expand_weight(w, b)
    xt = jnp.transpose(x, (0, 2, 1)).reshape(ROWS, SEQ_LEN)      # [bs*nvars, seq]
    y = _embed_matmul(xt, w_exp, b_exp)                          # [bs*nvars, np*dm]
    return y.reshape(BS, NVARS, NUM_PATCH, D_MODEL)


# ----------------------------- pure-JAX reference ----------------------------
def _reference(x, w, b):
    # mirrors torch: x[:, s_begin:, :].unfold(1, patch_len, stride) -> permute -> Linear
    pats = jnp.stack(
        [x[:, S_BEGIN + p * STRIDE: S_BEGIN + p * STRIDE + PATCH_LEN, :]
         for p in range(NUM_PATCH)], axis=1)              # [bs, np, patch_len, nvars]
    pats = jnp.transpose(pats, (0, 1, 3, 2))              # [bs, np, nvars, patch_len]
    pats = jnp.transpose(pats, (0, 2, 1, 3))              # permute(0, 2, 1, 3)
    return pats @ w + b                                   # [bs, nvars, np, d_model]


# ---------------------------------- main -------------------------------------
if __name__ == "__main__":
    key = jax.random.PRNGKey(0)
    kx, kw, kb = jax.random.split(key, 3)
    x = jax.random.normal(kx, (BS, SEQ_LEN, NVARS), jnp.float32)
    w = jax.random.normal(kw, (PATCH_LEN, D_MODEL), jnp.float32) * PATCH_LEN ** -0.5
    b = jax.random.normal(kb, (D_MODEL,), jnp.float32) * 0.02

    out = jax.block_until_ready(patchtst_embed(x, w, b))
    assert out.shape == (BS, NVARS, NUM_PATCH, D_MODEL), out.shape
    assert bool(jnp.all(jnp.isfinite(out)))

    ref = _reference(x, w, b)
    max_err = float(jnp.max(jnp.abs(out - ref)))
    assert max_err < 1e-3, max_err
    print("KERNEL_OK")
</pallas_src>

<mosaic_0001>
module attributes {stable_mosaic.version = 11 : i64} {
  func.func @_embed_kernel(%arg0: i32, %arg1: memref<8x16xf32, #tpu.memory_space<vmem>>, %arg2: memref<16x96xf32, #tpu.memory_space<vmem>>, %arg3: memref<1x96xf32, #tpu.memory_space<vmem>>, %arg4: memref<8x96xf32, #tpu.memory_space<vmem>>) attributes {dimension_semantics = [#tpu.dimension_semantics<parallel>], iteration_bounds = array<i64: 1>, scalar_prefetch = 0 : i64, scratch_operands = 0 : i64, tpu.core_type = #tpu.core_type<tc>, window_params = [{transform_indices = @transform_0, window_bounds = array<i64: 8, 16>}, {pipeline_mode = #tpu.pipeline_mode<synchronous>, transform_indices = @transform_1, window_bounds = array<i64: 16, 96>}, {pipeline_mode = #tpu.pipeline_mode<synchronous>, transform_indices = @transform_2, window_bounds = array<i64: 1, 96>}, {transform_indices = @transform_3, window_bounds = array<i64: 8, 96>}]} {
    %c0 = arith.constant 0 : index
    %c0_0 = arith.constant 0 : index
    %0 = vector.load %arg1[%c0, %c0_0] : memref<8x16xf32, #tpu.memory_space<vmem>>, vector<8x16xf32>
    %c0_1 = arith.constant 0 : index
    %c0_2 = arith.constant 0 : index
    %1 = vector.load %arg2[%c0_1, %c0_2] : memref<16x96xf32, #tpu.memory_space<vmem>>, vector<16x96xf32>
    %cst = arith.constant dense<0.000000e+00> : vector<8x96xf32>
    %2 = tpu.matmul %0, %1, %cst {dimension_numbers = #tpu.dot_dimension_numbers<[1], [0], [0], [1], [0, 0, 1, 1], [], []>} : vector<8x16xf32>, vector<16x96xf32>, vector<8x96xf32> -> vector<8x96xf32>
    %c0_3 = arith.constant 0 : index
    %c0_4 = arith.constant 0 : index
    %3 = vector.load %arg3[%c0_3, %c0_4] : memref<1x96xf32, #tpu.memory_space<vmem>>, vector<1x96xf32>
    %4 = vector.broadcast %3 : vector<1x96xf32> to vector<8x96xf32>
    %5 = arith.addf %2, %4 : vector<8x96xf32>
    %c0_5 = arith.constant 0 : index
    %c0_6 = arith.constant 0 : index
    %6 = vector.load %arg4[%c0_5, %c0_6] : memref<8x96xf32, #tpu.memory_space<vmem>>, vector<8x96xf32>
    tpu.vector_store %arg4[%c0_5, %c0_6], %5 {strides = array<i32>} : memref<8x96xf32, #tpu.memory_space<vmem>>, vector<8x96xf32>,
    return
  }
  func.func @transform_0(%arg0: i32) -> (i32, i32) {
    %c0_i32 = arith.constant 0 : i32
    %c0_i32_0 = arith.constant 0 : i32
    return %arg0, %c0_i32 : i32, i32
  }
  func.func @transform_1(%arg0: i32) -> (i32, i32) {
    %c0_i32 = arith.constant 0 : i32
    %c0_i32_0 = arith.constant 0 : i32
    %c0_i32_1 = arith.constant 0 : i32
    return %c0_i32, %c0_i32_0 : i32, i32
  }
  func.func @transform_2(%arg0: i32) -> (i32, i32) {
    %c0_i32 = arith.constant 0 : i32
    %c0_i32_0 = arith.constant 0 : i32
    %c0_i32_1 = arith.constant 0 : i32
    return %c0_i32, %c0_i32_0 : i32, i32
  }
  func.func @transform_3(%arg0: i32) -> (i32, i32) {
    %c0_i32 = arith.constant 0 : i32
    %c0_i32_0 = arith.constant 0 : i32
    return %arg0, %c0_i32 : i32, i32
  }
}

</mosaic_0001>

<llo_original>
// kernel: patchtst_embed.1
$region0: #{patchtst_embed.1}
  #allocation0 [shape = 'u32[]', space=smem, size = 0x4, offset = 0x4, fixed_abs, tag = 'smem constant byte address 0x4 - core index']
  #allocation1 [shape = 'u32[144,128]{1,0:T(1,128)}', space=vmem, size = 0x12000, scoped, tag = 'internal scratch']
  %s0 = inlined_call_operand.vmem [shape: f32[8,16], index: 0, kind: input, shape index: {}]
  %s1 = inlined_call_operand.vmem [shape: f32[16,96], index: 1, kind: input, shape index: {}]
  %s2 = inlined_call_operand.vmem [shape: f32[1,96], index: 2, kind: input, shape index: {}]
  %s3 = inlined_call_operand.vmem [shape: f32[8,96], index: 3, kind: output, shape index: {}]
  %s4 = sld [smem:[#allocation0]]
  $region22: #{patchtst_embed.1} parent=0
    _
  %s6 = ssub.s32 1, %s4
  %s7 = scalar_select 0, %s6, %s4
  // Predicated region
  $region2: #{patchtst_embed.1} parent=0 // pred_check
    _
  $region3: #{patchtst_embed.1} parent=0 // pred_check_branch
    %9 = sbr.rel (0) target = $region5
  $region4: #{patchtst_embed.1} parent=0 // pred_region
    _
  $region5: #{patchtst_embed.1} parent=0 // pred_fallthru
    _
  // Predicated region
  $region6: #{patchtst_embed.1} parent=0 // pred_check
    _
  $region7: #{patchtst_embed.1} parent=0 // pred_check_branch
    %11 = sbr.rel (0) target = $region9
  $region8: #{patchtst_embed.1} parent=0 // pred_region
    _
  $region9: #{patchtst_embed.1} parent=0 // pred_fallthru
    _
  // Predicated region
  $region10: #{patchtst_embed.1} parent=0 // pred_check
    _
  $region11: #{patchtst_embed.1} parent=0 // pred_check_branch
    %13 = sbr.rel (0) target = $region13
  $region12: #{patchtst_embed.1} parent=0 // pred_region
    _
  $region13: #{patchtst_embed.1} parent=0 // pred_fallthru
    _
  %v14 = vld [vmem:[%s0] sm:$0xff]
  %v15 = vld [vmem:[%s1] sm:$0xff]
  %v16 = vld [vmem:[%s1 + $0x8] sm:$0xff]
  %v17 = vld [vmem:[%s2] sm:$0x1]
  %v19 = vlaneseq
  %v20 = vshrl.u32 %v19, 7
  %v21 = vsub.s32 0, %v20
  %v22 = vrot.slane %v17, %v21
  %vm24 = vcmask 130048
  %v26 = vsel %vm24, %v14, 0
  %28 = vmatprep.subr.mxu0 0.0
  %29 = vmatpush1.msra.mxu0 %v15
  %30 = vmatprep.subr.mxu0 0.0
  %31 = vmatpush1.msra.mxu0 %v16
  %32 = vmatprep.subr.mxu0 0.0
  %33 = vmatpush1.msra.mxu0 0.0
  %34 = vmatprep.subr.mxu0 0.0
  %35 = vmatpush1.msra.mxu0 0.0
  %36 = vmatprep.subr.mxu0 0.0
  %37 = vmatpush1.msra.mxu0 0.0
  %38 = vmatprep.subr.mxu0 0.0
  %39 = vmatpush1.msra.mxu0 0.0
  %40 = vmatprep.subr.mxu0 0.0
  %41 = vmatpush1.msra.mxu0 0.0
  %42 = vmatprep.subr.mxu0 0.0
  %43 = vmatpush1.msra.mxu0 0.0
  %44 = vmatprep.subr.mxu0 0.0
  %45 = vmatpush1.msra.mxu0 0.0
  %46 = vmatprep.subr.mxu0 0.0
  %47 = vmatpush1.msra.mxu0 0.0
  %48 = vmatprep.subr.mxu0 0.0
  %49 = vmatpush1.msra.mxu0 0.0
  %50 = vmatprep.subr.mxu0 0.0
  %51 = vmatpush1.msra.mxu0 0.0
  %52 = vmatprep.subr.mxu0 0.0
  %53 = vmatpush1.msra.mxu0 0.0
  %54 = vmatprep.subr.mxu0 0.0
  %55 = vmatpush1.msra.mxu0 0.0
  %56 = vmatprep.subr.mxu0 0.0
  %57 = vmatpush1.msra.mxu0 0.0
  %58 = vmatprep.subr.mxu0 0.0
  %59 = vmatpush1.msra.mxu0 0.0
  %60 = vmatprep.subr.mxu0 0.0
  %61 = vmatpush1.msra.mxu0 0.0
  %62 = vmatprep.subr.mxu0 0.0
  %63 = vmatpush1.msra.mxu0 0.0
  %64 = vmatprep.subr.mxu0 0.0
  %65 = vmatpush1.msra.mxu0 0.0
  %66 = vmatprep.subr.mxu0 0.0
  %67 = vmatpush1.msra.mxu0 0.0
  %68 = vmatprep.subr.mxu0 0.0
  %69 = vmatpush1.msra.mxu0 0.0
  %70 = vmatprep.subr.mxu0 0.0
  %71 = vmatpush1.msra.mxu0 0.0
  %72 = vmatprep.subr.mxu0 0.0
  %73 = vmatpush1.msra.mxu0 0.0
  %74 = vmatprep.subr.mxu0 0.0
  %75 = vmatpush1.msra.mxu0 0.0
  %76 = vmatprep.subr.mxu0 0.0
  %77 = vmatpush1.msra.mxu0 0.0
  %78 = vmatprep.subr.mxu0 0.0
  %79 = vmatpush1.msra.mxu0 0.0
  %80 = vmatprep.subr.mxu0 0.0
  %81 = vmatpush1.msra.mxu0 0.0
  %82 = vmatprep.subr.mxu0 0.0
  %83 = vmatpush1.msra.mxu0 0.0
  %84 = vmatprep.subr.mxu0 0.0
  %85 = vmatpush1.msra.mxu0 0.0
  %86 = vmatprep.subr.mxu0 0.0
  %87 = vmatpush1.msra.mxu0 0.0
  %88 = vmatprep.subr.mxu0 0.0
  %89 = vmatpush1.msra.mxu0 0.0
  %90 = vmatprep.subr.mxu0 0.0
  %91 = vmatpush1.msra.mxu0 0.0
  %92 = vmatprep.mubr.f32.mxu0 0.0
  %93 = vmatmul.mubr.f32.gmra.mrb[0].mxu0 %v26
  %v94 = vpop.f32.mrb[0].mxu0
  %v95 = vadd.f32 %v22, %v94
  %v96 = vpop.f32.mrb[0].mxu0
  %97 = vdwg.mxu0
  %vm98 = vcmask 785408
  %99 = vst.msk [vmem:[%s3] sm:$0xff] %vm98, %v95
  // Predicated region
  $region14: #{patchtst_embed.1} parent=0 // pred_check
    _
  $region15: #{patchtst_embed.1} parent=0 // pred_check_branch
    %101 = sbr.rel (0) target = $region17
  $region16: #{patchtst_embed.1} parent=0 // pred_region
    _
  $region17: #{patchtst_embed.1} parent=0 // pred_fallthru
    _
  // Predicated region
  $region18: #{patchtst_embed.1} parent=0 // pred_check
    _
  $region19: #{patchtst_embed.1} parent=0 // pred_check_branch
    %103 = sbr.rel (0) target = $region21
  $region20: #{patchtst_embed.1} parent=0 // pred_region
    _
  $region21: #{patchtst_embed.1} parent=0 // pred_fallthru
    _

</llo_original>
